<compile_context>
chip_gen: v5e
topology: v5e:2x2
jax: 0.10.0
libtpu: 0.0.40
codegen_flags: <defaults>
</compile_context>

<pallas_src>
import functools

import numpy as np

import jax
import jax.numpy as jnp
from jax import lax
from jax.experimental import pallas as pl
from jax.experimental.pallas import tpu as pltpu

LN_EPS = 1e-5
_STREAM_TARGET_BYTES = 2 << 20      # aim for ~2 MiB of x per grid step
_DEFAULT_VMEM_BYTES = 64 << 20      # conservative fallback (v7x per-core VMEM)


def _round_up(v, m):
    return ((v + m - 1) // m) * m


def _vmem_capacity_bytes():
    try:
        cap = int(getattr(pltpu.get_tpu_info(), "vmem_capacity_bytes", 0))
        if cap > 0:
            return cap
    except Exception:
        pass
    return _DEFAULT_VMEM_BYTES


def _make_point_disc_kernel(apply_mask):
    """Build the kernel; `apply_mask` is a static (trace-time) flag."""

    def kernel(x_ref, w1_ref, packed_ref, b2_ref, *rest):
        if apply_mask:
            mask_ref, o_ref = rest
        else:
            (o_ref,) = rest

        # Linear 1 on the MXU: bf16 (or f32) inputs, f32 accumulation.
        h = jnp.dot(x_ref[...], w1_ref[...],
                    preferred_element_type=jnp.float32)       # (TM, C) f32
        h = h + packed_ref[0:1, :]                            # + b1 (1, C)

        # LayerNorm over the feature (lane) dim, elementwise affine (f32).
        mu = jnp.mean(h, axis=-1, keepdims=True)
        d = h - mu
        var = jnp.mean(d * d, axis=-1, keepdims=True)
        inv = lax.rsqrt(var + LN_EPS)
        # Fold inv_std into gamma: hn = d * (inv*gamma) + beta.
        hn = d * (inv * packed_ref[1:2, :]) + packed_ref[2:3, :]

        hr = jnp.maximum(hn, 0.0)                             # ReLU

        # Linear 2: (1, C) . (TM, C)^T -> lane-dense (1, TM) score row.
        # TODO(synk): if bundle dumps show vxpose/XLU pressure at large C,
        # switch to jnp.sum(hr * w2_row, axis=-1) + one (TM,1)->(1,TM) relayout.
        z = lax.dot_general(packed_ref[3:4, :], hr,
                            (((1,), (1,)), ((), ())),
                            preferred_element_type=jnp.float32)
        z = z + b2_ref[0]                                     # + b2 (SMEM scalar)

        if apply_mask:
            z = z * mask_ref[0]                               # (1, TM) mask row

        o_ref[...] = z[None].astype(o_ref.dtype)              # (1, 1, TM) store

    return kernel


@functools.partial(jax.jit, static_argnames=("tile_m", "stream_dtype"))
def point_discriminator(x, params, mask=None, *, tile_m=None,
                        stream_dtype=jnp.bfloat16):
    """x: (B, N, C) float; mask: optional (B, N). Returns (B*N, 1) float32."""
    B, N, C = x.shape
    M = B * N
    apply_mask = mask is not None

    itemsize = int(np.dtype(stream_dtype).itemsize)
    c_pad = _round_up(C, 128)

    # ---- Row-tile selection (all static Python ints) -----------------------
    if tile_m is None:
        # Stream >= ~2 MiB of x per grid step so the ~0.35us/step pipeline
        # overhead is amortized; never below 512 rows.
        tm = _round_up(max(512, _STREAM_TARGET_BYTES // (itemsize * C)), 128)
    else:
        tm = _round_up(max(int(tile_m), 128), 128)

    # Generation-aware VMEM budget with lane-padded footprints.
    vmem_budget = (3 * _vmem_capacity_bytes()) // 4
    fixed_bytes = (c_pad * c_pad * itemsize            # W1, single-buffered
                   + 8 * c_pad * 4                     # packed (4,C) f32, 1 buf
                   + (64 << 10))                       # slack (b2, descriptors)
    per_row_bytes = (2 * c_pad * itemsize              # x, double-buffered
                     + 2 * 4                           # out row, double-buffered
                     + (2 * 4 if apply_mask else 0))   # mask row, double-buffered
    tm_budget = max(128, ((vmem_budget - fixed_bytes) // per_row_bytes) // 128 * 128)
    tm = min(tm, tm_budget)
    # TODO(synk): K-tiled W1 accumulation path for C large enough that a single
    # resident bf16 W1 no longer fits the v7x budget (C >~ 5k).

    # Leave >= 2 grid steps when M allows (v7x: split 'parallel' axis over 2 TCs).
    if M >= 256:
        tm = min(tm, _round_up(pl.cdiv(M, 2), 128))
    # Never use a block larger than the whole problem: a single exact-extent
    # block when tm >= M (grid of 1), otherwise keep tm (multiple of 128) and
    # let Pallas handle the partial last block -- no wrapper-side pad of x.
    if tm >= M:
        tm = M

    grid_len = pl.cdiv(M, tm)
    m_pad = grid_len * tm

    # ---- Operands -----------------------------------------------------------
    x2 = x.reshape(M, C).astype(stream_dtype)                  # streamed, NOT padded
    w1_t = params["w1"].T.astype(stream_dtype)                 # (C_in, C_out)
    packed = jnp.stack(
        [params["b1"], params["gamma"], params["beta"],
         params["w2"].reshape(C)], axis=0).astype(jnp.float32)  # (4, C)
    b2 = params["b2"].reshape(1).astype(jnp.float32)            # SMEM scalar

    resident = pl.Buffered(1)   # constant index_map -> second buffer never used
    in_specs = [
        pl.BlockSpec((tm, C), lambda i: (i, 0)),                       # x rows
        pl.BlockSpec((C, C), lambda i: (0, 0), pipeline_mode=resident),  # W1^T
        pl.BlockSpec((4, C), lambda i: (0, 0), pipeline_mode=resident),  # params
        pl.BlockSpec(memory_space=pltpu.MemorySpace.SMEM),             # b2
    ]
    operands = [x2, w1_t, packed, b2]

    if apply_mask:
        m1 = mask.reshape(M).astype(jnp.float32)
        if m_pad != M:                       # tiny (M,) pad; x itself is never padded
            m1 = jnp.pad(m1, (0, m_pad - M))
        operands.append(m1.reshape(grid_len, 1, tm))
        in_specs.append(pl.BlockSpec((1, 1, tm), lambda i: (i, 0, 0)))

    est_vmem = fixed_bytes + tm * per_row_bytes
    vmem_limit = int(min(vmem_budget,
                         max(32 << 20, est_vmem * 5 // 4 + (2 << 20))))

    out3d = pl.pallas_call(
        _make_point_disc_kernel(apply_mask),
        out_shape=jax.ShapeDtypeStruct((grid_len, 1, tm), jnp.float32),
        grid_spec=pltpu.PrefetchScalarGridSpec(
            num_scalar_prefetch=0,
            grid=(grid_len,),
            in_specs=in_specs,
            out_specs=pl.BlockSpec((1, 1, tm), lambda i: (i, 0, 0)),
        ),
        compiler_params=pltpu.CompilerParams(
            dimension_semantics=("parallel",),
            vmem_limit_bytes=vmem_limit),
    )(*operands)

    # Lane-dense (G, 1, TM) buffer back to the module's (M, 1) view.
    return out3d.reshape(m_pad, 1)[:M]


def init_params(key, code_nfts):
    """Deterministic synthetic init (shapes follow nn.Linear / nn.LayerNorm)."""
    k1, k2, k3, k4 = jax.random.split(key, 4)
    scale1 = 1.0 / jnp.sqrt(code_nfts)
    return {
        "w1": jax.random.uniform(k1, (code_nfts, code_nfts), jnp.float32,
                                 -scale1, scale1),           # Linear(C, C).weight
        "b1": jax.random.uniform(k2, (code_nfts,), jnp.float32, -scale1, scale1),
        "gamma": jnp.ones((code_nfts,), jnp.float32),         # LayerNorm weight
        "beta": jnp.zeros((code_nfts,), jnp.float32),         # LayerNorm bias
        "w2": jax.random.uniform(k3, (1, code_nfts), jnp.float32,
                                 -scale1, scale1),            # Linear(C, 1).weight
        "b2": jax.random.uniform(k4, (1,), jnp.float32, -scale1, scale1),
    }


def _reference(x, params, mask=None, stream_dtype=None):
    """Plain-JAX reference mirroring the PyTorch forward.

    If stream_dtype is given, x and W1 are cast to it before the first matmul
    (f32 accumulation), mirroring the kernel's streaming precision.
    """
    xs, w1 = x, params["w1"]
    if stream_dtype is not None:
        xs = xs.astype(stream_dtype)
        w1 = w1.astype(stream_dtype)
    h = jnp.einsum("bnc,oc->bno", xs, w1,
                   preferred_element_type=jnp.float32) + params["b1"]
    mu = jnp.mean(h, axis=-1, keepdims=True)
    var = jnp.mean((h - mu) ** 2, axis=-1, keepdims=True)
    hn = (h - mu) / jnp.sqrt(var + LN_EPS) * params["gamma"] + params["beta"]
    hr = jnp.maximum(hn, 0.0)
    z = jnp.einsum("bnc,oc->bno", hr, params["w2"],
                   preferred_element_type=jnp.float32) + params["b2"]
    z = z.reshape(-1, 1)
    if mask is not None:
        z = z * mask.reshape(-1, 1)
    return z


if __name__ == "__main__":
    key = jax.random.PRNGKey(0)
    kx, km, kp, kx2, km2 = jax.random.split(key, 5)

    # Small shapes consistent with the module (batch, points, code_nfts).
    B, N, C = 2, 8, 32
    x = jax.random.normal(kx, (B, N, C), dtype=jnp.float32)
    mask = (jax.random.uniform(km, (B, N)) > 0.3).astype(jnp.float32)
    params = init_params(kp, C)
    ref_f32 = _reference(x, params, mask)

    # 1) f32 streaming path: exact check against the plain-f32 reference.
    out_f32 = jax.block_until_ready(
        point_discriminator(x, params, mask, stream_dtype=jnp.float32))
    assert out_f32.shape == (B * N, 1)
    assert jnp.allclose(out_f32, ref_f32, atol=2e-3, rtol=2e-3), \
        "mismatch vs f32 reference (mask, f32 stream)"

    # 2) Default bf16 streaming path (mask): tight check against the
    #    bf16-mirrored reference, loose sanity vs the pure-f32 reference.
    out_bf = jax.block_until_ready(point_discriminator(x, params, mask))
    ref_bf = _reference(x, params, mask, stream_dtype=jnp.bfloat16)
    assert jnp.allclose(out_bf, ref_bf, atol=5e-3, rtol=5e-3), \
        "mismatch vs bf16-mirrored reference (mask)"
    assert jnp.allclose(out_bf, ref_f32, atol=6e-2, rtol=6e-2), \
        "bf16 path too far from f32 reference (mask)"

    # 3) mask=None path: separate compiled variant, no mask stream at all.
    out_nm = jax.block_until_ready(point_discriminator(x, params, None))
    assert jnp.allclose(out_nm,
                        _reference(x, params, None, stream_dtype=jnp.bfloat16),
                        atol=5e-3, rtol=5e-3), "mismatch vs reference (no mask)"

    # 4) Multi-tile grid with a partial last block and NO wrapper pad of x:
    #    M = 3*700 = 2100 rows, tile_m=256 -> grid 9, last block 52 valid rows.
    B2, N2 = 3, 700
    x_big = jax.random.normal(kx2, (B2, N2, C), dtype=jnp.float32)
    mask_big = (jax.random.uniform(km2, (B2, N2)) > 0.5).astype(jnp.float32)
    out_big = jax.block_until_ready(
        point_discriminator(x_big, params, mask_big, tile_m=256))
    ref_big = _reference(x_big, params, mask_big, stream_dtype=jnp.bfloat16)
    assert out_big.shape == (B2 * N2, 1)
    assert jnp.allclose(out_big, ref_big, atol=5e-3, rtol=5e-3), \
        "mismatch vs reference (multi-tile, partial last block)"

    print("KERNEL_OK")
</pallas_src>

<mosaic_0001>
module attributes {stable_mosaic.version = 11 : i64} {
  func.func @kernel(%arg0: i32, %arg1: memref<16x32xf32, #tpu.memory_space<vmem>>, %arg2: memref<32x32xf32, #tpu.memory_space<vmem>>, %arg3: memref<4x32xf32, #tpu.memory_space<vmem>>, %arg4: memref<1xf32, #tpu.memory_space<smem>>, %arg5: memref<1x1x16xf32, #tpu.memory_space<vmem>>, %arg6: memref<1x1x16xf32, #tpu.memory_space<vmem>>) attributes {dimension_semantics = [#tpu.dimension_semantics<parallel>], iteration_bounds = array<i64: 1>, scalar_prefetch = 0 : i64, scratch_operands = 0 : i64, tpu.core_type = #tpu.core_type<tc>, window_params = [{transform_indices = @transform_0, window_bounds = array<i64: 16, 32>}, {pipeline_mode = #tpu.pipeline_mode<synchronous>, transform_indices = @transform_1, window_bounds = array<i64: 32, 32>}, {pipeline_mode = #tpu.pipeline_mode<synchronous>, transform_indices = @transform_2, window_bounds = array<i64: 4, 32>}, {transform_indices = @transform_3, window_bounds = array<i64: 1>}, {transform_indices = @transform_4, window_bounds = array<i64: 1, 1, 16>}, {transform_indices = @transform_5, window_bounds = array<i64: 1, 1, 16>}]} {
    %c0 = arith.constant 0 : index
    %c0_0 = arith.constant 0 : index
    %0 = vector.load %arg1[%c0, %c0_0] : memref<16x32xf32, #tpu.memory_space<vmem>>, vector<16x32xf32>
    %c0_1 = arith.constant 0 : index
    %c0_2 = arith.constant 0 : index
    %1 = vector.load %arg2[%c0_1, %c0_2] : memref<32x32xf32, #tpu.memory_space<vmem>>, vector<32x32xf32>
    %cst = arith.constant dense<0.000000e+00> : vector<16x32xf32>
    %2 = tpu.matmul %0, %1, %cst {dimension_numbers = #tpu.dot_dimension_numbers<[1], [0], [0], [1], [0, 0, 1, 1], [], []>} : vector<16x32xf32>, vector<32x32xf32>, vector<16x32xf32> -> vector<16x32xf32>
    %c0_3 = arith.constant 0 : index
    %c0_4 = arith.constant 0 : index
    %3 = vector.load %arg3[%c0_3, %c0_4] : memref<4x32xf32, #tpu.memory_space<vmem>>, vector<1x32xf32>
    %4 = vector.broadcast %3 : vector<1x32xf32> to vector<16x32xf32>
    %5 = arith.addf %2, %4 : vector<16x32xf32>
    %cst_5 = arith.constant dense<0.000000e+00> : vector<16xf32>
    %6 = vector.multi_reduction <add>, %5, %cst_5 [1] : vector<16x32xf32> to vector<16xf32>
    %7 = vector.shape_cast %6 : vector<16xf32> to vector<16x1xf32>
    %cst_6 = arith.constant 3.200000e+01 : f32
    %8 = vector.broadcast %cst_6 : f32 to vector<16x1xf32>
    %9 = arith.divf %7, %8 : vector<16x1xf32>
    %10 = vector.broadcast %9 : vector<16x1xf32> to vector<16x32xf32>
    %11 = arith.subf %5, %10 : vector<16x32xf32>
    %12 = arith.mulf %11, %11 : vector<16x32xf32>
    %cst_7 = arith.constant dense<0.000000e+00> : vector<16xf32>
    %13 = vector.multi_reduction <add>, %12, %cst_7 [1] : vector<16x32xf32> to vector<16xf32>
    %14 = vector.shape_cast %13 : vector<16xf32> to vector<16x1xf32>
    %cst_8 = arith.constant 3.200000e+01 : f32
    %15 = vector.broadcast %cst_8 : f32 to vector<16x1xf32>
    %16 = arith.divf %14, %15 : vector<16x1xf32>
    %cst_9 = arith.constant 9.99999974E-6 : f32
    %17 = vector.broadcast %cst_9 : f32 to vector<16x1xf32>
    %18 = arith.addf %16, %17 : vector<16x1xf32>
    %19 = math.rsqrt %18 : vector<16x1xf32>
    %c1 = arith.constant 1 : index
    %c0_10 = arith.constant 0 : index
    %20 = vector.load %arg3[%c1, %c0_10] : memref<4x32xf32, #tpu.memory_space<vmem>>, vector<1x32xf32>
    %21 = vector.broadcast %19 : vector<16x1xf32> to vector<16x32xf32>
    %22 = vector.broadcast %20 : vector<1x32xf32> to vector<16x32xf32>
    %23 = arith.mulf %21, %22 : vector<16x32xf32>
    %24 = arith.mulf %11, %23 : vector<16x32xf32>
    %c2 = arith.constant 2 : index
    %c0_11 = arith.constant 0 : index
    %25 = vector.load %arg3[%c2, %c0_11] : memref<4x32xf32, #tpu.memory_space<vmem>>, vector<1x32xf32>
    %26 = vector.broadcast %25 : vector<1x32xf32> to vector<16x32xf32>
    %27 = arith.addf %24, %26 : vector<16x32xf32>
    %cst_12 = arith.constant 0.000000e+00 : f32
    %28 = vector.broadcast %cst_12 : f32 to vector<16x32xf32>
    %29 = arith.maximumf %27, %28 : vector<16x32xf32>
    %c3 = arith.constant 3 : index
    %c0_13 = arith.constant 0 : index
    %30 = vector.load %arg3[%c3, %c0_13] : memref<4x32xf32, #tpu.memory_space<vmem>>, vector<1x32xf32>
    %cst_14 = arith.constant dense<0.000000e+00> : vector<1x16xf32>
    %31 = tpu.matmul %30, %29, %cst_14 {dimension_numbers = #tpu.dot_dimension_numbers<[1], [1], [0], [0], [0, 0, 1, 0], [], []>} : vector<1x32xf32>, vector<16x32xf32>, vector<1x16xf32> -> vector<1x16xf32>
    %c0_15 = arith.constant 0 : index
    %32 = memref.load %arg4[%c0_15] : memref<1xf32, #tpu.memory_space<smem>>
    %33 = vector.broadcast %32 : f32 to vector<1x16xf32>
    %34 = arith.addf %31, %33 : vector<1x16xf32>
    %c0_16 = arith.constant 0 : index
    %c0_17 = arith.constant 0 : index
    %c0_18 = arith.constant 0 : index
    %35 = vector.load %arg5[%c0_16, %c0_17, %c0_18] : memref<1x1x16xf32, #tpu.memory_space<vmem>>, vector<1x1x16xf32>
    %36 = vector.shape_cast %35 : vector<1x1x16xf32> to vector<1x16xf32>
    %37 = arith.mulf %34, %36 : vector<1x16xf32>
    %38 = vector.shape_cast %37 : vector<1x16xf32> to vector<1x1x16xf32>
    %c0_19 = arith.constant 0 : index
    %c0_20 = arith.constant 0 : index
    %c0_21 = arith.constant 0 : index
    %39 = vector.load %arg6[%c0_19, %c0_20, %c0_21] : memref<1x1x16xf32, #tpu.memory_space<vmem>>, vector<1x1x16xf32>
    tpu.vector_store %arg6[%c0_19, %c0_20, %c0_21], %38 {strides = array<i32>} : memref<1x1x16xf32, #tpu.memory_space<vmem>>, vector<1x1x16xf32>,
    return
  }
  func.func @transform_0(%arg0: i32) -> (i32, i32) {
    %c0_i32 = arith.constant 0 : i32
    %c0_i32_0 = arith.constant 0 : i32
    return %arg0, %c0_i32 : i32, i32
  }
  func.func @transform_1(%arg0: i32) -> (i32, i32) {
    %c0_i32 = arith.constant 0 : i32
    %c0_i32_0 = arith.constant 0 : i32
    %c0_i32_1 = arith.constant 0 : i32
    return %c0_i32, %c0_i32_0 : i32, i32
  }
  func.func @transform_2(%arg0: i32) -> (i32, i32) {
    %c0_i32 = arith.constant 0 : i32
    %c0_i32_0 = arith.constant 0 : i32
    %c0_i32_1 = arith.constant 0 : i32
    return %c0_i32, %c0_i32_0 : i32, i32
  }
  func.func @transform_3(%arg0: i32) -> i32 {
    %c0_i32 = arith.constant 0 : i32
    %c0_i32_0 = arith.constant 0 : i32
    return %c0_i32 : i32
  }
  func.func @transform_4(%arg0: i32) -> (i32, i32, i32) {
    %c0_i32 = arith.constant 0 : i32
    %c0_i32_0 = arith.constant 0 : i32
    %c0_i32_1 = arith.constant 0 : i32
    return %arg0, %c0_i32, %c0_i32_0 : i32, i32, i32
  }
  func.func @transform_5(%arg0: i32) -> (i32, i32, i32) {
    %c0_i32 = arith.constant 0 : i32
    %c0_i32_0 = arith.constant 0 : i32
    %c0_i32_1 = arith.constant 0 : i32
    return %arg0, %c0_i32, %c0_i32_0 : i32, i32, i32
  }
}

</mosaic_0001>

<llo_original>
// kernel: point_discriminator.1
$region0: #{point_discriminator.1}
  #allocation0 [shape = 'u32[]', space=smem, size = 0x4, offset = 0x4, fixed_abs, tag = 'smem constant byte address 0x4 - core index']
  #allocation1 [shape = 'u32[72,128]{1,0:T(1,128)}', space=vmem, size = 0x9000, scoped, tag = 'internal scratch']
  #allocation2 [shape = 'f32[1]{0:T(128)S(6)}', space=smem, size = 0x200, scoped, tag = 'scoped memory for point_discriminator.1']
  %s0 = inlined_call_operand.vmem [shape: f32[16,32], index: 0, kind: input, shape index: {}]
  %s1 = inlined_call_operand.vmem [shape: f32[32,32], index: 1, kind: input, shape index: {}]
  %s2 = inlined_call_operand.vmem [shape: f32[4,32], index: 2, kind: input, shape index: {}]
  %s3 = inlined_call_operand.<no memory space> [shape: f32[1], index: 3, kind: input, shape index: {}]
  %s4 = inlined_call_operand.vmem [shape: f32[1,1,16], index: 4, kind: input, shape index: {}]
  %s5 = inlined_call_operand.hbm [shape: f32[1,1,16], index: 5, kind: output, shape index: {}]
  %s6 = sld [smem:[#allocation0]]
  $region30: #{point_discriminator.1} parent=0
    _
  %s8 = ssub.s32 1, %s6
  %s9 = scalar_select 0, %s8, %s6
  %10 = sst [smem:[#allocation2]] %s3
  $region1: #{point_discriminator.1} parent=0
    #allocation3 [shape = 'u8[512]{0}', space=vmem, size = 0x400, scoped, tag = 'output window, operand 0, single buffered']
    #allocation4 [shape = 's32[1]{0}', space=sflag, size = 0x4, scoped, tag = 'scoped memory for point_discriminator.1']
    %11 = vsyncpa [#allocation4], 0
    // Predicated region
    $region2: #{point_discriminator.1} parent=1 // pred_check
      _
    $region3: #{point_discriminator.1} parent=1 // pred_check_branch
      %13 = sbr.rel (0) target = $region5
    $region4: #{point_discriminator.1} parent=1 // pred_region
      _
    $region5: #{point_discriminator.1} parent=1 // pred_fallthru
      _
    // Predicated region
    $region6: #{point_discriminator.1} parent=1 // pred_check
      _
    $region7: #{point_discriminator.1} parent=1 // pred_check_branch
      %15 = sbr.rel (0) target = $region9
    $region8: #{point_discriminator.1} parent=1 // pred_region
      _
    $region9: #{point_discriminator.1} parent=1 // pred_fallthru
      _
    // Predicated region
    $region10: #{point_discriminator.1} parent=1 // pred_check
      _
    $region11: #{point_discriminator.1} parent=1 // pred_check_branch
      %17 = sbr.rel (0) target = $region13
    $region12: #{point_discriminator.1} parent=1 // pred_region
      _
    $region13: #{point_discriminator.1} parent=1 // pred_fallthru
      _
    // Predicated region
    $region14: #{point_discriminator.1} parent=1 // pred_check
      _
    $region15: #{point_discriminator.1} parent=1 // pred_check_branch
      %19 = sbr.rel (0) target = $region17
    $region16: #{point_discriminator.1} parent=1 // pred_region
      _
    $region17: #{point_discriminator.1} parent=1 // pred_fallthru
      _
    // Predicated region
    $region18: #{point_discriminator.1} parent=1 // pred_check
      _
    $region19: #{point_discriminator.1} parent=1 // pred_check_branch
      %21 = sbr.rel (0) target = $region21
    $region20: #{point_discriminator.1} parent=1 // pred_region
      _
    $region21: #{point_discriminator.1} parent=1 // pred_fallthru
      _
    %v22 = vld [vmem:[%s0] sm:$0xff]
    %v23 = vld [vmem:[%s0 + $0x8] sm:$0xff]
    %v24 = vld [vmem:[%s1] sm:$0xff]
    %v25 = vld [vmem:[%s1 + $0x8] sm:$0xff]
    %v26 = vld [vmem:[%s1 + $0x10] sm:$0xff]
    %v27 = vld [vmem:[%s1 + $0x18] sm:$0xff]
    %v28 = vld [vmem:[%s2] sm:$0x1]
    %v29 = vperm.slane %v28, 0
    %vm30 = vcmask 261120
    %v32 = vsel %vm30, %v22, 0
    %v35 = vsel %vm30, %v23, 0
    %37 = vmatpush.msra.mxu0 0.0
    %38 = vmatpush.msra.mxu0 0.0
    %39 = vmatpush.msra.mxu0 0.0
    %40 = vmatpush.msra.mxu0 0.0
    %41 = vmatpush.msra.mxu0 0.0
    %42 = vmatpush.msra.mxu0 0.0
    %43 = vmatpush.msra.mxu0 0.0
    %44 = vmatpush.msra.mxu0 0.0
    %45 = vmatpush.msra.mxu0 0.0
    %46 = vmatpush.msra.mxu0 0.0
    %47 = vmatpush.msra.mxu0 0.0
    %48 = vmatpush.msra.mxu0 0.0
    %49 = vmatpush.msra.mxu0 %v27
    %50 = vmatpush.msra.mxu0 %v26
    %51 = vmatpush.msra.mxu0 %v25
    %52 = vmatpush.msra.mxu0 %v24
    %53 = vmatmul.f32.gmra.mxu0 %v32
    %v54 = vpop.f32.mrf.mxu0
    %v55 = vadd.f32 %v29, %v54
    %56 = vmatmul.f32.gmra.mxu0 %v35
    %v57 = vpop.f32.mrf.mxu0
    %v58 = vadd.f32 %v29, %v57
    %59 = vdwg.mxu0
    %v60 = vsel %vm30, %v55, 0.0
    %61 = vadd.xlane.f32.xlu0 %v60
    %v62 = vpop.xlane.xlu0 %61
    %v63 = vsel %vm30, %v58, 0.0
    %64 = vadd.xlane.f32.xlu0 %v63
    %v65 = vpop.xlane.xlu0 %64
    %v66 = vrcp.pop 32.0
    %v67 = vmul.f32 32.0, %v66
    %v68 = vsub.f32 1.0, %v67
    %v69 = vmul.f32 %v66, %v68
    %v70 = vadd.f32 %v66, %v69
    %vm71 = vweird.f32 %v66
    %v72 = vsel %vm71, %v66, %v70
    %v73 = vmul.f32 %v62, %v72
    %v74 = vmul.f32 %v65, %v72
    %v75 = vsub.f32 %v55, %v73
    %v76 = vsub.f32 %v58, %v74
    %v77 = vmul.f32 %v75, %v75
    %v78 = vmul.f32 %v76, %v76
    %v79 = vsel %vm30, %v77, 0.0
    %80 = vadd.xlane.f32.xlu0 %v79
    %v81 = vpop.xlane.xlu0 %80
    %v82 = vsel %vm30, %v78, 0.0
    %83 = vadd.xlane.f32.xlu0 %v82
    %v84 = vpop.xlane.xlu0 %83
    %v85 = vmul.f32 %v81, %v72
    %v86 = vmul.f32 %v84, %v72
    %v87 = vadd.f32 %v85, 1e-05
    %v88 = vadd.f32 %v86, 1e-05
    %v89 = vrsqrt.pop %v87
    %v90 = vmul.f32 %v89, %v87
    %v91 = vmul.f32 %v90, %v89
    %v92 = vmul.f32 0.5, %v91
    %v93 = vsub.f32 1.5, %v92
    %v94 = vmul.f32 %v89, %v93
    %vm95 = vweird.f32 %v87
    %vm96 = vweird.f32 %v89
    %vm97 = vmor %vm95, %vm96
    %v98 = vsel %vm97, %v89, %v94
    %v99 = vrsqrt.pop %v88
    %v100 = vmul.f32 %v99, %v88
    %v101 = vmul.f32 %v100, %v99
    %v102 = vmul.f32 0.5, %v101
    %v103 = vsub.f32 1.5, %v102
    %v104 = vmul.f32 %v99, %v103
    %vm105 = vweird.f32 %v88
    %vm106 = vweird.f32 %v99
    %vm107 = vmor %vm105, %vm106
    %v108 = vsel %vm107, %v99, %v104
    %v109 = vld [vmem:[%s2 + $0x1] sm:$0x1]
    %v110 = vperm.slane %v109, 0
    %v111 = vmul.f32 %v98, %v110
    %v112 = vmul.f32 %v108, %v110
    %v113 = vmul.f32 %v75, %v111
    %v114 = vmul.f32 %v76, %v112
    %v115 = vld [vmem:[%s2 + $0x2] sm:$0x1]
    %v116 = vperm.slane %v115, 0
    %v117 = vadd.f32 %v113, %v116
    %v118 = vadd.f32 %v114, %v116
    %v119 = vmax.f32 %v117, 0.0
    %v120 = vmax.f32 %v118, 0.0
    %v121 = vld [vmem:[%s2 + $0x3] sm:$0x1]
    %s122 = sld [smem:[#allocation2]]
    %v123 = vstv %s122
    %v125 = vsel %vm30, %v121, 0
    %v128 = vsel %vm30, %v119, 0
    %v131 = vsel %vm30, %v120, 0
    %133 = vmatpush.xpose.msra.mxu0 0.0
    %134 = vmatpush.xpose.msra.mxu0 0.0
    %135 = vmatpush.xpose.msra.mxu0 0.0
    %136 = vmatpush.xpose.msra.mxu0 0.0
    %137 = vmatpush.xpose.msra.mxu0 0.0
    %138 = vmatpush.xpose.msra.mxu0 0.0
    %139 = vmatpush.xpose.msra.mxu0 0.0
    %140 = vmatpush.xpose.msra.mxu0 0.0
    %141 = vmatpush.xpose.msra.mxu0 0.0
    %142 = vmatpush.xpose.msra.mxu0 0.0
    %143 = vmatpush.xpose.msra.mxu0 0.0
    %144 = vmatpush.xpose.msra.mxu0 0.0
    %145 = vmatpush.xpose.msra.mxu0 0.0
    %146 = vmatpush.xpose.msra.mxu0 0.0
    %147 = vmatpush.xpose.msra.mxu0 %v131
    %148 = vmatpush.xpose.msra.mxu0 %v128
    %149 = vmatmul.f32.gmra.mxu0 %v125
    %v150 = vpop.f32.mrf.mxu0
    %v151 = vadd.f32 %v123, %v150
    %152 = vdwg.mxu0
    %v153 = vld [vmem:[%s4] sm:$0x1]
    %v154 = vmul.f32 %v151, %v153
    %vm155 = vcmask 122880
    %156 = vst.msk [vmem:[#allocation3] sm:$0x1] %vm155, %v154
    // Predicated region
    $region22: #{point_discriminator.1} parent=1 // pred_check
      _
    $region23: #{point_discriminator.1} parent=1 // pred_check_branch
      %158 = sbr.rel (0) target = $region25
    $region24: #{point_discriminator.1} parent=1 // pred_region
      %160 = vsyncadd [#allocation4], 0
      %s162 = sshll.u32 [#allocation3], 4
      %s163 = int_to_ptr.vmem [resolvable:$true] %s162
      %s164 = sshll.u32 %s5, 4
      %s165 = int_to_ptr.hbm [resolvable:$true] %s164
      %167 = dma.vmem_to_hbm [thread:$0]  %s163, 16, %s165, [#allocation4]
    $region25: #{point_discriminator.1} parent=1 // pred_fallthru
      _
    // Predicated region
    $region26: #{point_discriminator.1} parent=1 // pred_check
      _
    $region27: #{point_discriminator.1} parent=1 // pred_check_branch
      %169 = sbr.rel (0) target = $region29
    $region28: #{point_discriminator.1} parent=1 // pred_region
      %171 = dma.done [#allocation4], 16
    $region29: #{point_discriminator.1} parent=1 // pred_fallthru
      _
    %172 = vsyncpa [#allocation4], 1

</llo_original>
